<compile_context>
chip_gen: v7x
topology: tpu7x:2x2x1
jax: 0.10.0
libtpu: 0.0.40
codegen_flags: <defaults>
</compile_context>

<pallas_src>
import functools

import jax
import jax.numpy as jnp
from jax.experimental import pallas as pl
from jax.experimental.pallas import tpu as pltpu


def _round_up(n, m):
    return ((n + m - 1) // m) * m


def _make_mlp_kernel(num_layers, compute_dtype, epilogue_dtype):
    """Fused MLP kernel: refs = (x, w0, b0, w1, b1, ..., out)."""
    compute_dtype = jnp.dtype(compute_dtype)
    epilogue_dtype = jnp.dtype(epilogue_dtype)

    def kernel(*refs):
        x_ref = refs[0]
        o_ref = refs[1 + 2 * num_layers]
        h = x_ref[...]
        if h.dtype != compute_dtype:            # single cast (no f32 round trip)
            h = h.astype(compute_dtype)
        for i in range(num_layers):
            w = refs[1 + 2 * i][...]
            b = refs[2 + 2 * i][...]
            if w.dtype != compute_dtype:        # no-op when weights stored in
                w = w.astype(compute_dtype)     # the compute dtype (bf16 path)
            acc = jnp.dot(h, w, preferred_element_type=jnp.float32)   # MXU, f32 acc
            if b.dtype != epilogue_dtype:
                b = b.astype(epilogue_dtype)
            h = acc.astype(epilogue_dtype) + b   # bias add in epilogue dtype
            if i < num_layers - 1:
                h = jnp.maximum(h, 0.0)          # ReLU on the VPU
                if h.dtype != compute_dtype:     # only when epilogue=f32, compute=bf16
                    h = h.astype(compute_dtype)
        o_ref[...] = h.astype(o_ref.dtype)

    return kernel


def init_dqn_params(key, input_size, hidden_sizes, output_size,
                    dtype=jnp.float32):
    """Logical (unpadded) params mimicking nn.Linear init (U(+-1/sqrt(fan_in)))."""
    sizes = [input_size] + list(hidden_sizes) + [output_size]
    params = []
    for i in range(len(sizes) - 1):
        fan_in, fan_out = sizes[i], sizes[i + 1]
        key, kw, kb = jax.random.split(key, 3)
        bound = 1.0 / float(fan_in) ** 0.5
        w = jax.random.uniform(kw, (fan_in, fan_out), dtype, -bound, bound)
        b = jax.random.uniform(kb, (fan_out,), dtype, -bound, bound)
        params.append((w, b))
    return params


def pad_params_lane_dense(params, weight_dtype=None, bias_dtype=None):
    """Zero-pad feature dims to multiples of 128 lanes (done once at init).

    The FIRST layer's input (K) dim is left unpadded so x can be fed to the
    kernel without any wrapper-side feature padding.  Zero padding elsewhere is
    numerically exact for matmul + bias + ReLU.  For the bf16 path pass
    weight_dtype=bias_dtype=jnp.bfloat16 so no casts happen inside the kernel.
    """
    padded = []
    for idx, (w, b) in enumerate(params):
        fi, fo = w.shape
        fip = fi if idx == 0 else _round_up(fi, 128)
        fop = _round_up(fo, 128)                 # keep 128 (not 256) on all gens
        wd = w.dtype if weight_dtype is None else jnp.dtype(weight_dtype)
        bd = jnp.float32 if bias_dtype is None else jnp.dtype(bias_dtype)
        wp = jnp.zeros((fip, fop), wd).at[:fi, :fo].set(w.astype(wd))
        bp = jnp.zeros((1, fop), bd).at[0, :fo].set(b.astype(bd))
        padded.append((wp, bp))
    return padded


@functools.partial(
    jax.jit,
    static_argnames=("output_size", "batch_tile", "compute_dtype",
                     "epilogue_dtype", "min_grid", "return_padded"))
def dqn_forward(padded_params, x, *, output_size, batch_tile=512,
                compute_dtype=jnp.float32, epilogue_dtype=None,
                min_grid=2, return_padded=False):
    """Full DQN forward pass as a single fused, batch-tiled Pallas call."""
    B, F_in = x.shape
    num_layers = len(padded_params)
    if padded_params[0][0].shape[0] != F_in:
        raise ValueError("layer-0 weight K dim must equal input feature size "
                         "(use pad_params_lane_dense, which keeps K unpadded).")
    F_out_pad = padded_params[-1][0].shape[1]

    if epilogue_dtype is None:
        # bf16 epilogue for the bf16 path (v6e/v7x); pass jnp.float32 on v5e.
        epilogue_dtype = (jnp.float32 if jnp.dtype(compute_dtype) == jnp.float32
                          else compute_dtype)

    # --- batch tiling: minimal padding, >=2 grid steps for v7x's two TCs ------
    eff_min_grid = max(1, min(int(min_grid), B // 8))
    grid_n = max(pl.cdiv(B, batch_tile), eff_min_grid)
    TB = _round_up(pl.cdiv(B, grid_n), 8)        # sublane-aligned tile
    B_pad = grid_n * TB                          # pads < 8 rows per grid step
    if B_pad != B:
        x = jnp.pad(x, ((0, B_pad - B), (0, 0))) # batch-only pad (feature dim untouched)

    # --- specs ----------------------------------------------------------------
    in_specs = [pl.BlockSpec((TB, F_in), lambda i: (i, 0))]
    flat_params = []
    vmem_est = 2 * TB * (F_in + F_out_pad) * x.dtype.itemsize  # dbl-buffered act tiles
    for w, b in padded_params:
        w_bytes = w.size * w.dtype.itemsize
        b_bytes = b.size * b.dtype.itemsize
        if w_bytes > (4 << 20):
            # Constant block index across the grid -> no benefit from
            # double-buffering big weights; halve their VMEM footprint.
            in_specs.append(pl.BlockSpec(w.shape, lambda i: (0, 0),
                                         pipeline_mode=pl.Buffered(1)))
            vmem_est += w_bytes
        else:
            in_specs.append(pl.BlockSpec(w.shape, lambda i: (0, 0)))
            vmem_est += 2 * w_bytes
        in_specs.append(pl.BlockSpec(b.shape, lambda i: (0, 0)))
        vmem_est += 2 * b_bytes
        flat_params += [w, b]

    vmem_limit = None
    if vmem_est > (28 << 20):                    # above the ~32 MiB scoped default
        vmem_limit = int(min(vmem_est * 3 // 2, 64 << 20))  # 64 MiB: safe on v7x too

    out_pad = pl.pallas_call(
        _make_mlp_kernel(num_layers, compute_dtype, epilogue_dtype),
        out_shape=jax.ShapeDtypeStruct((B_pad, F_out_pad), x.dtype),
        grid=(grid_n,),
        in_specs=in_specs,
        out_specs=pl.BlockSpec((TB, F_out_pad), lambda i: (i, 0)),
        compiler_params=pltpu.CompilerParams(
            dimension_semantics=("parallel",),   # v7x: 2 TCs split the batch
            vmem_limit_bytes=vmem_limit),
    )(x, *flat_params)

    if return_padded:
        # Caller slices / argmaxes the lane-dense slab itself (skips one launch).
        return out_pad
    return out_pad[:B, :output_size]


if __name__ == "__main__":
    # Small shapes consistent with the module's constructor.
    batch = 8
    input_size = 32
    hidden_sizes = [64, 64]
    output_size = 8

    key = jax.random.PRNGKey(0)
    key, kx = jax.random.split(key)
    x = jax.random.normal(kx, (batch, input_size), jnp.float32)

    params = init_dqn_params(key, input_size, hidden_sizes, output_size)
    # f32 storage/compute for exact parity.  For v6e/v7x throughput use:
    #   pad_params_lane_dense(params, weight_dtype=jnp.bfloat16,
    #                         bias_dtype=jnp.bfloat16)
    #   dqn_forward(..., compute_dtype=jnp.bfloat16)       (bf16 epilogue)
    # and on v5e additionally pass epilogue_dtype=jnp.float32.
    padded_params = pad_params_lane_dense(params)

    out = dqn_forward(padded_params, x, output_size=output_size)
    out = jax.block_until_ready(out)

    # Pure-JAX reference of the same math on the unpadded params.
    ref = x
    for i, (w, b) in enumerate(params):
        ref = ref @ w + b
        if i < len(params) - 1:
            ref = jnp.maximum(ref, 0.0)

    assert out.shape == (batch, output_size)
    assert jnp.allclose(out, ref, atol=1e-4, rtol=1e-4)

    print("KERNEL_OK")
</pallas_src>

<mosaic_0001>
module attributes {stable_mosaic.version = 11 : i64} {
  func.func @kernel(%arg0: i32, %arg1: memref<8x32xf32, #tpu.memory_space<vmem>>, %arg2: memref<32x128xf32, #tpu.memory_space<vmem>>, %arg3: memref<1x128xf32, #tpu.memory_space<vmem>>, %arg4: memref<128x128xf32, #tpu.memory_space<vmem>>, %arg5: memref<1x128xf32, #tpu.memory_space<vmem>>, %arg6: memref<128x128xf32, #tpu.memory_space<vmem>>, %arg7: memref<1x128xf32, #tpu.memory_space<vmem>>, %arg8: memref<8x128xf32, #tpu.memory_space<vmem>>) attributes {dimension_semantics = [#tpu.dimension_semantics<parallel>], iteration_bounds = array<i64: 1>, scalar_prefetch = 0 : i64, scratch_operands = 0 : i64, tpu.core_type = #tpu.core_type<tc>, window_params = [{transform_indices = @transform_0, window_bounds = array<i64: 8, 32>}, {pipeline_mode = #tpu.pipeline_mode<synchronous>, transform_indices = @transform_1, window_bounds = array<i64: 32, 128>}, {pipeline_mode = #tpu.pipeline_mode<synchronous>, transform_indices = @transform_2, window_bounds = array<i64: 1, 128>}, {pipeline_mode = #tpu.pipeline_mode<synchronous>, transform_indices = @transform_3, window_bounds = array<i64: 128, 128>}, {pipeline_mode = #tpu.pipeline_mode<synchronous>, transform_indices = @transform_4, window_bounds = array<i64: 1, 128>}, {pipeline_mode = #tpu.pipeline_mode<synchronous>, transform_indices = @transform_5, window_bounds = array<i64: 128, 128>}, {pipeline_mode = #tpu.pipeline_mode<synchronous>, transform_indices = @transform_6, window_bounds = array<i64: 1, 128>}, {transform_indices = @transform_7, window_bounds = array<i64: 8, 128>}]} {
    %c0 = arith.constant 0 : index
    %c0_0 = arith.constant 0 : index
    %0 = vector.load %arg1[%c0, %c0_0] : memref<8x32xf32, #tpu.memory_space<vmem>>, vector<8x32xf32>
    %c0_1 = arith.constant 0 : index
    %c0_2 = arith.constant 0 : index
    %1 = vector.load %arg2[%c0_1, %c0_2] : memref<32x128xf32, #tpu.memory_space<vmem>>, vector<32x128xf32>
    %c0_3 = arith.constant 0 : index
    %c0_4 = arith.constant 0 : index
    %2 = vector.load %arg3[%c0_3, %c0_4] : memref<1x128xf32, #tpu.memory_space<vmem>>, vector<1x128xf32>
    %cst = arith.constant dense<0.000000e+00> : vector<8x128xf32>
    %3 = tpu.matmul %0, %1, %cst {dimension_numbers = #tpu.dot_dimension_numbers<[1], [0], [0], [1], [0, 0, 1, 1], [], []>} : vector<8x32xf32>, vector<32x128xf32>, vector<8x128xf32> -> vector<8x128xf32>
    %4 = vector.broadcast %2 : vector<1x128xf32> to vector<8x128xf32>
    %5 = arith.addf %3, %4 : vector<8x128xf32>
    %cst_5 = arith.constant 0.000000e+00 : f32
    %6 = vector.broadcast %cst_5 : f32 to vector<8x128xf32>
    %7 = arith.maximumf %5, %6 : vector<8x128xf32>
    %c0_6 = arith.constant 0 : index
    %c0_7 = arith.constant 0 : index
    %8 = vector.load %arg4[%c0_6, %c0_7] : memref<128x128xf32, #tpu.memory_space<vmem>>, vector<128x128xf32>
    %c0_8 = arith.constant 0 : index
    %c0_9 = arith.constant 0 : index
    %9 = vector.load %arg5[%c0_8, %c0_9] : memref<1x128xf32, #tpu.memory_space<vmem>>, vector<1x128xf32>
    %cst_10 = arith.constant dense<0.000000e+00> : vector<8x128xf32>
    %10 = tpu.matmul %7, %8, %cst_10 {dimension_numbers = #tpu.dot_dimension_numbers<[1], [0], [0], [1], [0, 0, 1, 1], [], []>} : vector<8x128xf32>, vector<128x128xf32>, vector<8x128xf32> -> vector<8x128xf32>
    %11 = vector.broadcast %9 : vector<1x128xf32> to vector<8x128xf32>
    %12 = arith.addf %10, %11 : vector<8x128xf32>
    %cst_11 = arith.constant 0.000000e+00 : f32
    %13 = vector.broadcast %cst_11 : f32 to vector<8x128xf32>
    %14 = arith.maximumf %12, %13 : vector<8x128xf32>
    %c0_12 = arith.constant 0 : index
    %c0_13 = arith.constant 0 : index
    %15 = vector.load %arg6[%c0_12, %c0_13] : memref<128x128xf32, #tpu.memory_space<vmem>>, vector<128x128xf32>
    %c0_14 = arith.constant 0 : index
    %c0_15 = arith.constant 0 : index
    %16 = vector.load %arg7[%c0_14, %c0_15] : memref<1x128xf32, #tpu.memory_space<vmem>>, vector<1x128xf32>
    %cst_16 = arith.constant dense<0.000000e+00> : vector<8x128xf32>
    %17 = tpu.matmul %14, %15, %cst_16 {dimension_numbers = #tpu.dot_dimension_numbers<[1], [0], [0], [1], [0, 0, 1, 1], [], []>} : vector<8x128xf32>, vector<128x128xf32>, vector<8x128xf32> -> vector<8x128xf32>
    %18 = vector.broadcast %16 : vector<1x128xf32> to vector<8x128xf32>
    %19 = arith.addf %17, %18 : vector<8x128xf32>
    %c0_17 = arith.constant 0 : index
    %c0_18 = arith.constant 0 : index
    %20 = vector.load %arg8[%c0_17, %c0_18] : memref<8x128xf32, #tpu.memory_space<vmem>>, vector<8x128xf32>
    tpu.vector_store %arg8[%c0_17, %c0_18], %19 {strides = array<i32>} : memref<8x128xf32, #tpu.memory_space<vmem>>, vector<8x128xf32>,
    return
  }
  func.func @transform_0(%arg0: i32) -> (i32, i32) {
    %c0_i32 = arith.constant 0 : i32
    %c0_i32_0 = arith.constant 0 : i32
    return %arg0, %c0_i32 : i32, i32
  }
  func.func @transform_1(%arg0: i32) -> (i32, i32) {
    %c0_i32 = arith.constant 0 : i32
    %c0_i32_0 = arith.constant 0 : i32
    %c0_i32_1 = arith.constant 0 : i32
    return %c0_i32, %c0_i32_0 : i32, i32
  }
  func.func @transform_2(%arg0: i32) -> (i32, i32) {
    %c0_i32 = arith.constant 0 : i32
    %c0_i32_0 = arith.constant 0 : i32
    %c0_i32_1 = arith.constant 0 : i32
    return %c0_i32, %c0_i32_0 : i32, i32
  }
  func.func @transform_3(%arg0: i32) -> (i32, i32) {
    %c0_i32 = arith.constant 0 : i32
    %c0_i32_0 = arith.constant 0 : i32
    %c0_i32_1 = arith.constant 0 : i32
    return %c0_i32, %c0_i32_0 : i32, i32
  }
  func.func @transform_4(%arg0: i32) -> (i32, i32) {
    %c0_i32 = arith.constant 0 : i32
    %c0_i32_0 = arith.constant 0 : i32
    %c0_i32_1 = arith.constant 0 : i32
    return %c0_i32, %c0_i32_0 : i32, i32
  }
  func.func @transform_5(%arg0: i32) -> (i32, i32) {
    %c0_i32 = arith.constant 0 : i32
    %c0_i32_0 = arith.constant 0 : i32
    %c0_i32_1 = arith.constant 0 : i32
    return %c0_i32, %c0_i32_0 : i32, i32
  }
  func.func @transform_6(%arg0: i32) -> (i32, i32) {
    %c0_i32 = arith.constant 0 : i32
    %c0_i32_0 = arith.constant 0 : i32
    %c0_i32_1 = arith.constant 0 : i32
    return %c0_i32, %c0_i32_0 : i32, i32
  }
  func.func @transform_7(%arg0: i32) -> (i32, i32) {
    %c0_i32 = arith.constant 0 : i32
    %c0_i32_0 = arith.constant 0 : i32
    return %arg0, %c0_i32 : i32, i32
  }
}

</mosaic_0001>

<llo_original>
// kernel: dqn_forward.1
$region0: #{dqn_forward.1}
  #allocation0 [shape = 'u32[]', space=smem, size = 0x4, offset = 0x4, fixed_abs, tag = 'smem constant byte address 0x4 - core index']
  #allocation1 [shape = 'u32[144,128]{1,0:T(1,128)}', space=vmem, size = 0x12000, scoped, tag = 'internal scratch']
  %s0 = inlined_call_operand.vmem [shape: f32[8,32], index: 0, kind: input, shape index: {}]
  %s1 = inlined_call_operand.hbm [shape: f32[32,128], index: 1, kind: input, shape index: {}]
  %s2 = inlined_call_operand.vmem [shape: f32[1,128], index: 2, kind: input, shape index: {}]
  %s3 = inlined_call_operand.hbm [shape: f32[128,128], index: 3, kind: input, shape index: {}]
  %s4 = inlined_call_operand.vmem [shape: f32[1,128], index: 4, kind: input, shape index: {}]
  %s5 = inlined_call_operand.hbm [shape: f32[128,128], index: 5, kind: input, shape index: {}]
  %s6 = inlined_call_operand.vmem [shape: f32[1,128], index: 6, kind: input, shape index: {}]
  %s7 = inlined_call_operand.hbm [shape: f32[8,128], index: 7, kind: output, shape index: {}]
  %s8 = sld [smem:[#allocation0]]
  $region50: #{dqn_forward.1} parent=0
    _
  %s10 = ssub.s32 1, %s8
  %s11 = scalar_select 0, %s10, %s8
  $region1: #{dqn_forward.1} parent=0
    #allocation2 [shape = 'u8[16384]{0}', space=vmem, size = 0x4000, scoped, tag = 'input window, operand 1, single buffered']
    #allocation3 [shape = 's32[1]{0}', space=sflag, size = 0x4, scoped, tag = 'scoped memory for dqn_forward.1']
    #allocation4 [shape = 's32[1]{0}', space=sflag, size = 0x4, scoped, tag = 'scoped memory for dqn_forward.1']
    #allocation5 [shape = 'u8[65536]{0}', space=vmem, size = 0x10000, scoped, tag = 'input window, operand 3, single buffered']
    #allocation6 [shape = 's32[1]{0}', space=sflag, size = 0x4, scoped, tag = 'scoped memory for dqn_forward.1']
    #allocation7 [shape = 'u8[65536]{0}', space=vmem, size = 0x10000, scoped, tag = 'input window, operand 5, single buffered']
    #allocation8 [shape = 'u8[4096]{0}', space=vmem, size = 0x1000, scoped, tag = 'output window, operand 0, single buffered']
    %12 = vsyncpa [#allocation3], 0
    %13 = vsyncpa [#allocation6], 0
    %14 = vsyncpa [#allocation4], 0
    // Predicated region
    $region2: #{dqn_forward.1} parent=1 // pred_check
      _
    $region3: #{dqn_forward.1} parent=1 // pred_check_branch
      %16 = sbr.rel (0) target = $region5
    $region4: #{dqn_forward.1} parent=1 // pred_region
      _
    $region5: #{dqn_forward.1} parent=1 // pred_fallthru
      _
    // Predicated region
    $region6: #{dqn_forward.1} parent=1 // pred_check
      _
    $region7: #{dqn_forward.1} parent=1 // pred_check_branch
      %18 = sbr.rel (0) target = $region9
    $region8: #{dqn_forward.1} parent=1 // pred_region
      %s20 = ssub.s32 512, 512
      %21 = vsyncadd [#allocation3], %s20
      %s22 = sshll.u32 [#allocation2], 4
      %s23 = int_to_ptr.vmem [resolvable:$true] %s22
      %28 = dma.hbm_to_vmem [thread:$0]  %s1, 512, %s23, [#allocation3], 128, 128, 8
    $region9: #{dqn_forward.1} parent=1 // pred_fallthru
      _
    // Predicated region
    $region10: #{dqn_forward.1} parent=1 // pred_check
      _
    $region11: #{dqn_forward.1} parent=1 // pred_check_branch
      %30 = sbr.rel (0) target = $region13
    $region12: #{dqn_forward.1} parent=1 // pred_region
      _
    $region13: #{dqn_forward.1} parent=1 // pred_fallthru
      _
    // Predicated region
    $region14: #{dqn_forward.1} parent=1 // pred_check
      _
    $region15: #{dqn_forward.1} parent=1 // pred_check_branch
      %32 = sbr.rel (0) target = $region17
    $region16: #{dqn_forward.1} parent=1 // pred_region
      %s34 = ssub.s32 2048, 2048
      %35 = vsyncadd [#allocation6], %s34
      %s36 = sshll.u32 [#allocation5], 4
      %s37 = int_to_ptr.vmem [resolvable:$true] %s36
      %42 = dma.hbm_to_vmem [thread:$0]  %s3, 2048, %s37, [#allocation6], 128, 128, 8
    $region17: #{dqn_forward.1} parent=1 // pred_fallthru
      _
    // Predicated region
    $region18: #{dqn_forward.1} parent=1 // pred_check
      _
    $region19: #{dqn_forward.1} parent=1 // pred_check_branch
      %44 = sbr.rel (0) target = $region21
    $region20: #{dqn_forward.1} parent=1 // pred_region
      _
    $region21: #{dqn_forward.1} parent=1 // pred_fallthru
      _
    // Predicated region
    $region22: #{dqn_forward.1} parent=1 // pred_check
      _
    $region23: #{dqn_forward.1} parent=1 // pred_check_branch
      %46 = sbr.rel (0) target = $region25
    $region24: #{dqn_forward.1} parent=1 // pred_region
      %s48 = ssub.s32 2048, 2048
      %49 = vsyncadd [#allocation6], %s48
      %s50 = sshll.u32 [#allocation7], 4
      %s51 = int_to_ptr.vmem [resolvable:$true] %s50
      %56 = dma.hbm_to_vmem [thread:$0]  %s5, 2048, %s51, [#allocation6], 128, 128, 8
    $region25: #{dqn_forward.1} parent=1 // pred_fallthru
      _
    // Predicated region
    $region26: #{dqn_forward.1} parent=1 // pred_check
      _
    $region27: #{dqn_forward.1} parent=1 // pred_check_branch
      %58 = sbr.rel (0) target = $region29
    $region28: #{dqn_forward.1} parent=1 // pred_region
      _
    $region29: #{dqn_forward.1} parent=1 // pred_fallthru
      _
    // Predicated region
    $region30: #{dqn_forward.1} parent=1 // pred_check
      _
    $region31: #{dqn_forward.1} parent=1 // pred_check_branch
      %60 = sbr.rel (0) target = $region33
    $region32: #{dqn_forward.1} parent=1 // pred_region
      %61 = dma.done [#allocation3], 512
    $region33: #{dqn_forward.1} parent=1 // pred_fallthru
      _
    // Predicated region
    $region34: #{dqn_forward.1} parent=1 // pred_check
      _
    $region35: #{dqn_forward.1} parent=1 // pred_check_branch
      %63 = sbr.rel (0) target = $region37
    $region36: #{dqn_forward.1} parent=1 // pred_region
      %64 = dma.done [#allocation6], 2048
    $region37: #{dqn_forward.1} parent=1 // pred_fallthru
      _
    // Predicated region
    $region38: #{dqn_forward.1} parent=1 // pred_check
      _
    $region39: #{dqn_forward.1} parent=1 // pred_check_branch
      %66 = sbr.rel (0) target = $region41
    $region40: #{dqn_forward.1} parent=1 // pred_region
      %67 = dma.done [#allocation6], 2048
    $region41: #{dqn_forward.1} parent=1 // pred_fallthru
      _
    %v68 = vld [vmem:[%s0] sm:$0xff]
    %v69 = vld [vmem:[#allocation2] sm:$0xff]
    %v70 = vld [vmem:[#allocation2 + $0x8] sm:$0xff]
    %v71 = vld [vmem:[#allocation2 + $0x10] sm:$0xff]
    %v72 = vld [vmem:[#allocation2 + $0x18] sm:$0xff]
    %v73 = vld [vmem:[%s2] sm:$0x1]
    %v75 = vlaneseq
    %v76 = vshrl.u32 %v75, 7
    %v77 = vsub.s32 0, %v76
    %v78 = vrot.slane %v73, %v77
    %vm80 = vcmask 261120
    %v82 = vsel %vm80, %v68, 0
    %84 = vmatprep.subr.mxu0 0.0
    %85 = vmatpush1.msra.mxu0 %v69
    %86 = vmatprep.subr.mxu0 0.0
    %87 = vmatpush1.msra.mxu0 %v70
    %88 = vmatprep.subr.mxu0 0.0
    %89 = vmatpush1.msra.mxu0 %v71
    %90 = vmatprep.subr.mxu0 0.0
    %91 = vmatpush1.msra.mxu0 %v72
    %92 = vmatprep.subr.mxu0 0.0
    %93 = vmatpush1.msra.mxu0 0.0
    %94 = vmatprep.subr.mxu0 0.0
    %95 = vmatpush1.msra.mxu0 0.0
    %96 = vmatprep.subr.mxu0 0.0
    %97 = vmatpush1.msra.mxu0 0.0
    %98 = vmatprep.subr.mxu0 0.0
    %99 = vmatpush1.msra.mxu0 0.0
    %100 = vmatprep.subr.mxu0 0.0
    %101 = vmatpush1.msra.mxu0 0.0
    %102 = vmatprep.subr.mxu0 0.0
    %103 = vmatpush1.msra.mxu0 0.0
    %104 = vmatprep.subr.mxu0 0.0
    %105 = vmatpush1.msra.mxu0 0.0
    %106 = vmatprep.subr.mxu0 0.0
    %107 = vmatpush1.msra.mxu0 0.0
    %108 = vmatprep.subr.mxu0 0.0
    %109 = vmatpush1.msra.mxu0 0.0
    %110 = vmatprep.subr.mxu0 0.0
    %111 = vmatpush1.msra.mxu0 0.0
    %112 = vmatprep.subr.mxu0 0.0
    %113 = vmatpush1.msra.mxu0 0.0
    %114 = vmatprep.subr.mxu0 0.0
    %115 = vmatpush1.msra.mxu0 0.0
    %116 = vmatprep.subr.mxu0 0.0
    %117 = vmatpush1.msra.mxu0 0.0
    %118 = vmatprep.subr.mxu0 0.0
    %119 = vmatpush1.msra.mxu0 0.0
    %120 = vmatprep.subr.mxu0 0.0
    %121 = vmatpush1.msra.mxu0 0.0
    %122 = vmatprep.subr.mxu0 0.0
    %123 = vmatpush1.msra.mxu0 0.0
    %124 = vmatprep.subr.mxu0 0.0
    %125 = vmatpush1.msra.mxu0 0.0
    %126 = vmatprep.subr.mxu0 0.0
    %127 = vmatpush1.msra.mxu0 0.0
    %128 = vmatprep.subr.mxu0 0.0
    %129 = vmatpush1.msra.mxu0 0.0
    %130 = vmatprep.subr.mxu0 0.0
    %131 = vmatpush1.msra.mxu0 0.0
    %132 = vmatprep.subr.mxu0 0.0
    %133 = vmatpush1.msra.mxu0 0.0
    %134 = vmatprep.subr.mxu0 0.0
    %135 = vmatpush1.msra.mxu0 0.0
    %136 = vmatprep.subr.mxu0 0.0
    %137 = vmatpush1.msra.mxu0 0.0
    %138 = vmatprep.subr.mxu0 0.0
    %139 = vmatpush1.msra.mxu0 0.0
    %140 = vmatprep.subr.mxu0 0.0
    %141 = vmatpush1.msra.mxu0 0.0
    %142 = vmatprep.subr.mxu0 0.0
    %143 = vmatpush1.msra.mxu0 0.0
    %144 = vmatprep.subr.mxu0 0.0
    %145 = vmatpush1.msra.mxu0 0.0
    %146 = vmatprep.subr.mxu0 0.0
    %147 = vmatpush1.msra.mxu0 0.0
    %148 = vmatprep.mubr.f32.mxu0 0.0
    %149 = vmatmul.mubr.f32.gmra.mrb[0].mxu0 %v82
    %v150 = vpop.f32.mrb[0].mxu0
    %v151 = vadd.f32 %v78, %v150
    %v152 = vpop.f32.mrb[0].mxu0
    %153 = vdwg.mxu0
    %v154 = vmax.f32 %v151, 0.0
    %v155 = vld [vmem:[#allocation5] sm:$0xff]
    %v156 = vld [vmem:[#allocation5 + $0x8] sm:$0xff]
    %v157 = vld [vmem:[#allocation5 + $0x10] sm:$0xff]
    %v158 = vld [vmem:[#allocation5 + $0x18] sm:$0xff]
    %v159 = vld [vmem:[#allocation5 + $0x20] sm:$0xff]
    %v160 = vld [vmem:[#allocation5 + $0x28] sm:$0xff]
    %v161 = vld [vmem:[#allocation5 + $0x30] sm:$0xff]
    %v162 = vld [vmem:[#allocation5 + $0x38] sm:$0xff]
    %v163 = vld [vmem:[#allocation5 + $0x40] sm:$0xff]
    %v164 = vld [vmem:[#allocation5 + $0x48] sm:$0xff]
    %v165 = vld [vmem:[#allocation5 + $0x50] sm:$0xff]
    %v166 = vld [vmem:[#allocation5 + $0x58] sm:$0xff]
    %v167 = vld [vmem:[#allocation5 + $0x60] sm:$0xff]
    %v168 = vld [vmem:[#allocation5 + $0x68] sm:$0xff]
    %v169 = vld [vmem:[#allocation5 + $0x70] sm:$0xff]
    %v170 = vld [vmem:[#allocation5 + $0x78] sm:$0xff]
    %v171 = vld [vmem:[%s4] sm:$0x1]
    %v173 = vlaneseq
    %v174 = vshrl.u32 %v173, 7
    %v175 = vsub.s32 0, %v174
    %v176 = vrot.slane %v171, %v175
    %178 = vmatprep.subr.mxu0 0.0
    %179 = vmatpush1.msra.mxu0 %v155
    %180 = vmatprep.subr.mxu0 0.0
    %181 = vmatpush1.msra.mxu0 %v156
    %182 = vmatprep.subr.mxu0 0.0
    %183 = vmatpush1.msra.mxu0 %v157
    %184 = vmatprep.subr.mxu0 0.0
    %185 = vmatpush1.msra.mxu0 %v158
    %186 = vmatprep.subr.mxu0 0.0
    %187 = vmatpush1.msra.mxu0 %v159
    %188 = vmatprep.subr.mxu0 0.0
    %189 = vmatpush1.msra.mxu0 %v160
    %190 = vmatprep.subr.mxu0 0.0
    %191 = vmatpush1.msra.mxu0 %v161
    %192 = vmatprep.subr.mxu0 0.0
    %193 = vmatpush1.msra.mxu0 %v162
    %194 = vmatprep.subr.mxu0 0.0
    %195 = vmatpush1.msra.mxu0 %v163
    %196 = vmatprep.subr.mxu0 0.0
    %197 = vmatpush1.msra.mxu0 %v164
    %198 = vmatprep.subr.mxu0 0.0
    %199 = vmatpush1.msra.mxu0 %v165
    %200 = vmatprep.subr.mxu0 0.0
    %201 = vmatpush1.msra.mxu0 %v166
    %202 = vmatprep.subr.mxu0 0.0
    %203 = vmatpush1.msra.mxu0 %v167
    %204 = vmatprep.subr.mxu0 0.0
    %205 = vmatpush1.msra.mxu0 %v168
    %206 = vmatprep.subr.mxu0 0.0
    %207 = vmatpush1.msra.mxu0 %v169
    %208 = vmatprep.subr.mxu0 0.0
    %209 = vmatpush1.msra.mxu0 %v170
    %210 = vmatprep.subr.mxu0 0.0
    %211 = vmatpush1.msra.mxu0 0.0
    %212 = vmatprep.subr.mxu0 0.0
    %213 = vmatpush1.msra.mxu0 0.0
    %214 = vmatprep.subr.mxu0 0.0
    %215 = vmatpush1.msra.mxu0 0.0
    %216 = vmatprep.subr.mxu0 0.0
    %217 = vmatpush1.msra.mxu0 0.0
    %218 = vmatprep.subr.mxu0 0.0
    %219 = vmatpush1.msra.mxu0 0.0
    %220 = vmatprep.subr.mxu0 0.0
    %221 = vmatpush1.msra.mxu0 0.0
    %222 = vmatprep.subr.mxu0 0.0
    %223 = vmatpush1.msra.mxu0 0.0
    %224 = vmatprep.subr.mxu0 0.0
    %225 = vmatpush1.msra.mxu0 0.0
    %226 = vmatprep.subr.mxu0 0.0
    %227 = vmatpush1.msra.mxu0 0.0
    %228 = vmatprep.subr.mxu0 0.0
    %229 = vmatpush1.msra.mxu0 0.0
    %230 = vmatprep.subr.mxu0 0.0
    %231 = vmatpush1.msra.mxu0 0.0
    %232 = vmatprep.subr.mxu0 0.0
    %233 = vmatpush1.msra.mxu0 0.0
    %234 = vmatprep.subr.mxu0 0.0
    %235 = vmatpush1.msra.mxu0 0.0
    %236 = vmatprep.subr.mxu0 0.0
    %237 = vmatpush1.msra.mxu0 0.0
    %238 = vmatprep.subr.mxu0 0.0
    %239 = vmatpush1.msra.mxu0 0.0
    %240 = vmatprep.subr.mxu0 0.0
    %241 = vmatpush1.msra.mxu0 0.0
    %242 = vmatprep.mubr.f32.mxu0 0.0
    %243 = vmatmul.mubr.f32.gmra.mrb[0].mxu0 %v154
    %v244 = vpop.f32.mrb[0].mxu0
    %v245 = vadd.f32 %v176, %v244
    %v246 = vpop.f32.mrb[0].mxu0
    %247 = vdwg.mxu0
    %v248 = vmax.f32 %v245, 0.0
    %v249 = vld [vmem:[#allocation7] sm:$0xff]
    %v250 = vld [vmem:[#allocation7 + $0x8] sm:$0xff]
    %v251 = vld [vmem:[#allocation7 + $0x10] sm:$0xff]
    %v252 = vld [vmem:[#allocation7 + $0x18] sm:$0xff]
    %v253 = vld [vmem:[#allocation7 + $0x20] sm:$0xff]
    %v254 = vld [vmem:[#allocation7 + $0x28] sm:$0xff]
    %v255 = vld [vmem:[#allocation7 + $0x30] sm:$0xff]
    %v256 = vld [vmem:[#allocation7 + $0x38] sm:$0xff]
    %v257 = vld [vmem:[#allocation7 + $0x40] sm:$0xff]
    %v258 = vld [vmem:[#allocation7 + $0x48] sm:$0xff]
    %v259 = vld [vmem:[#allocation7 + $0x50] sm:$0xff]
    %v260 = vld [vmem:[#allocation7 + $0x58] sm:$0xff]
    %v261 = vld [vmem:[#allocation7 + $0x60] sm:$0xff]
    %v262 = vld [vmem:[#allocation7 + $0x68] sm:$0xff]
    %v263 = vld [vmem:[#allocation7 + $0x70] sm:$0xff]
    %v264 = vld [vmem:[#allocation7 + $0x78] sm:$0xff]
    %v265 = vld [vmem:[%s6] sm:$0x1]
    %v267 = vlaneseq
    %v268 = vshrl.u32 %v267, 7
    %v269 = vsub.s32 0, %v268
    %v270 = vrot.slane %v265, %v269
    %272 = vmatprep.subr.mxu0 0.0
    %273 = vmatpush1.msra.mxu0 %v249
    %274 = vmatprep.subr.mxu0 0.0
    %275 = vmatpush1.msra.mxu0 %v250
    %276 = vmatprep.subr.mxu0 0.0
    %277 = vmatpush1.msra.mxu0 %v251
    %278 = vmatprep.subr.mxu0 0.0
    %279 = vmatpush1.msra.mxu0 %v252
    %280 = vmatprep.subr.mxu0 0.0
    %281 = vmatpush1.msra.mxu0 %v253
    %282 = vmatprep.subr.mxu0 0.0
    %283 = vmatpush1.msra.mxu0 %v254
    %284 = vmatprep.subr.mxu0 0.0
    %285 = vmatpush1.msra.mxu0 %v255
    %286 = vmatprep.subr.mxu0 0.0
    %287 = vmatpush1.msra.mxu0 %v256
    %288 = vmatprep.subr.mxu0 0.0
    %289 = vmatpush1.msra.mxu0 %v257
    %290 = vmatprep.subr.mxu0 0.0
    %291 = vmatpush1.msra.mxu0 %v258
    %292 = vmatprep.subr.mxu0 0.0
    %293 = vmatpush1.msra.mxu0 %v259
    %294 = vmatprep.subr.mxu0 0.0
    %295 = vmatpush1.msra.mxu0 %v260
    %296 = vmatprep.subr.mxu0 0.0
    %297 = vmatpush1.msra.mxu0 %v261
    %298 = vmatprep.subr.mxu0 0.0
    %299 = vmatpush1.msra.mxu0 %v262
    %300 = vmatprep.subr.mxu0 0.0
    %301 = vmatpush1.msra.mxu0 %v263
    %302 = vmatprep.subr.mxu0 0.0
    %303 = vmatpush1.msra.mxu0 %v264
    %304 = vmatprep.subr.mxu0 0.0
    %305 = vmatpush1.msra.mxu0 0.0
    %306 = vmatprep.subr.mxu0 0.0
    %307 = vmatpush1.msra.mxu0 0.0
    %308 = vmatprep.subr.mxu0 0.0
    %309 = vmatpush1.msra.mxu0 0.0
    %310 = vmatprep.subr.mxu0 0.0
    %311 = vmatpush1.msra.mxu0 0.0
    %312 = vmatprep.subr.mxu0 0.0
    %313 = vmatpush1.msra.mxu0 0.0
    %314 = vmatprep.subr.mxu0 0.0
    %315 = vmatpush1.msra.mxu0 0.0
    %316 = vmatprep.subr.mxu0 0.0
    %317 = vmatpush1.msra.mxu0 0.0
    %318 = vmatprep.subr.mxu0 0.0
    %319 = vmatpush1.msra.mxu0 0.0
    %320 = vmatprep.subr.mxu0 0.0
    %321 = vmatpush1.msra.mxu0 0.0
    %322 = vmatprep.subr.mxu0 0.0
    %323 = vmatpush1.msra.mxu0 0.0
    %324 = vmatprep.subr.mxu0 0.0
    %325 = vmatpush1.msra.mxu0 0.0
    %326 = vmatprep.subr.mxu0 0.0
    %327 = vmatpush1.msra.mxu0 0.0
    %328 = vmatprep.subr.mxu0 0.0
    %329 = vmatpush1.msra.mxu0 0.0
    %330 = vmatprep.subr.mxu0 0.0
    %331 = vmatpush1.msra.mxu0 0.0
    %332 = vmatprep.subr.mxu0 0.0
    %333 = vmatpush1.msra.mxu0 0.0
    %334 = vmatprep.subr.mxu0 0.0
    %335 = vmatpush1.msra.mxu0 0.0
    %336 = vmatprep.mubr.f32.mxu0 0.0
    %337 = vmatmul.mubr.f32.gmra.mrb[0].mxu0 %v248
    %v338 = vpop.f32.mrb[0].mxu0
    %v339 = vadd.f32 %v270, %v338
    %v340 = vpop.f32.mrb[0].mxu0
    %341 = vdwg.mxu0
    %342 = vst [vmem:[#allocation8] sm:$0xff] %v339
    // Predicated region
    $region42: #{dqn_forward.1} parent=1 // pred_check
      _
    $region43: #{dqn_forward.1} parent=1 // pred_check_branch
      %344 = sbr.rel (0) target = $region45
    $region44: #{dqn_forward.1} parent=1 // pred_region
      %s346 = ssub.s32 128, 128
      %347 = vsyncadd [#allocation4], %s346
      %s349 = sshll.u32 [#allocation8], 4
      %s350 = int_to_ptr.vmem [resolvable:$true] %s349
      %352 = dma.vmem_to_hbm [thread:$0]  %s350, 128, %s7, [#allocation4]
    $region45: #{dqn_forward.1} parent=1 // pred_fallthru
      _
    // Predicated region
    $region46: #{dqn_forward.1} parent=1 // pred_check
      _
    $region47: #{dqn_forward.1} parent=1 // pred_check_branch
      %354 = sbr.rel (0) target = $region49
    $region48: #{dqn_forward.1} parent=1 // pred_region
      %355 = dma.done [#allocation4], 128
    $region49: #{dqn_forward.1} parent=1 // pred_fallthru
      _
    %356 = vsyncpa [#allocation3], 1
    %357 = vsyncpa [#allocation6], 1
    %358 = vsyncpa [#allocation4], 1

</llo_original>
